<compile_context>
chip_gen: v7x
topology: tpu7x:2x2x1
jax: 0.10.0
libtpu: 0.0.40
codegen_flags: <defaults>
</compile_context>

<pallas_src>
import functools

import jax
import jax.numpy as jnp
from jax import lax
from jax.experimental import pallas as pl
from jax.experimental.pallas import tpu as pltpu


def _fused_kernel(x_ref, w_ref, gamma_ref, beta_ref, bias_ref, o_ref,
                  *, eps, inv_div):
    # x_ref: (B, K) bf16, w_ref: (K, tn) bf16 -> MXU, f32 accumulate.
    y = jnp.dot(x_ref[...], w_ref[...], preferred_element_type=jnp.float32)

    # BatchNorm1d training-mode forward: batch mean, biased variance.
    # Correct because this tile contains the FULL batch.
    mean = jnp.mean(y, axis=0, keepdims=True)                 # (1, tn)
    centered = y - mean                                       # (B, tn), reused
    var = jnp.mean(centered * centered, axis=0, keepdims=True)

    # Per-feature scale / offset (cheap (1,tn) math), then one mul + one add
    # per element.  gamma, 1/divide_value, beta and the scalar bias are all
    # folded in here.
    scale = gamma_ref[...] * lax.rsqrt(var + eps) * inv_div   # (1, tn)
    offset = (beta_ref[...] + bias_ref[0]) * inv_div          # (1, tn)
    z = centered * scale + offset                             # (B, tn)

    # Swish: exp on EUP, divide via approximate reciprocal (EUP slot).
    sig = pl.reciprocal(1.0 + jnp.exp(-z), approx=True)
    o_ref[...] = (z * sig).astype(o_ref.dtype)


def fused_forward(x, w_t, gamma, beta, bias, *, eps, divide_value, tn=None):
    """x: (B, K) bf16, w_t: (K, N) bf16 (PyTorch weight transposed),
    gamma/beta: (1, N) f32, bias: (1,) f32.

    NOTE: the Linear layer's bias is intentionally NOT an input: it cancels
    exactly in training-mode BatchNorm (it shifts y and the batch mean by the
    same per-feature constant and leaves the variance unchanged)."""
    B, K = x.shape
    Kw, N = w_t.shape
    assert Kw == K, "weight shape mismatch"
    # Full batch must live in one tile (per-feature batch stats); f32 output
    # sublane tile is 8 rows (16 preferred for bf16 x packing).
    assert B % 8 == 0, "batch must be a multiple of 8 for this fused kernel"

    if tn is None:
        # Prefer 256-wide tiles (fills v6e/v7x MXU); fall back to 128 / N.
        if N % 256 == 0:
            tn = 256
        elif N % 128 == 0:
            tn = 128
        else:
            tn = N
    assert N % tn == 0 and (tn % 128 == 0 or tn == N), \
        "tn must be lane-aligned and divide N"
    grid_n = pl.cdiv(N, tn)

    # VMEM budget: resident x + double-buffered W tile + double-buffered out
    # tile + param tiles + f32 temporaries (y / centered / z) + headroom.
    vmem_bytes = (B * K * x.dtype.itemsize
                  + 2 * K * tn * w_t.dtype.itemsize
                  + 2 * B * tn * 4
                  + 4 * tn * 4
                  + 6 * B * tn * 4)
    vmem_limit = min(64 * 1024 * 1024,
                     max(32 * 1024 * 1024, 2 * vmem_bytes))

    cost = pl.CostEstimate(
        flops=2 * B * K * N,
        transcendentals=B * N,                       # exp in Swish
        bytes_accessed=(B * K * x.dtype.itemsize
                        + K * N * w_t.dtype.itemsize
                        + 2 * N * 4
                        + B * N * 4))

    kernel = functools.partial(_fused_kernel, eps=eps,
                               inv_div=1.0 / divide_value)
    return pl.pallas_call(
        kernel,
        out_shape=jax.ShapeDtypeStruct((B, N), jnp.float32),
        grid_spec=pltpu.PrefetchScalarGridSpec(
            num_scalar_prefetch=0,
            grid=(grid_n,),
            in_specs=[
                pl.BlockSpec((B, K), lambda j: (0, 0)),     # x: resident, full K
                pl.BlockSpec((K, tn), lambda j: (0, j)),    # W column tile
                pl.BlockSpec((1, tn), lambda j: (0, j)),    # gamma
                pl.BlockSpec((1, tn), lambda j: (0, j)),    # beta
                pl.BlockSpec(memory_space=pltpu.MemorySpace.SMEM),  # scalar bias
            ],
            out_specs=pl.BlockSpec((B, tn), lambda j: (0, j)),
        ),
        compiler_params=pltpu.CompilerParams(
            dimension_semantics=("parallel",),
            vmem_limit_bytes=vmem_limit),
        cost_estimate=cost,
    )(x, w_t, gamma, beta, bias)


def reference_forward(x_bf16, w_t_bf16, lin_b, gamma, beta, bias, *,
                      eps, divide_value):
    # Full module semantics (INCLUDING the Linear bias) with matching numerics:
    # bf16 MXU operands, f32 accumulate, f32 epilogue.
    y = jnp.dot(x_bf16, w_t_bf16, preferred_element_type=jnp.float32) + lin_b
    mean = jnp.mean(y, axis=0, keepdims=True)
    var = jnp.mean((y - mean) ** 2, axis=0, keepdims=True)
    z = (y - mean) * lax.rsqrt(var + eps)
    z = z * gamma + beta
    z = (z + bias[0]) / divide_value
    return z * jax.nn.sigmoid(z)


if __name__ == "__main__":
    # Shapes from the module spec (kept small): batch=16, in=1024, out=512.
    batch, in_features, out_features = 16, 1024, 512
    bn_eps = 1e-5
    divide_value = 1.0

    key = jax.random.PRNGKey(0)
    kx, kw, kb, kg, kbt, kbias = jax.random.split(key, 6)

    x_f32 = jax.random.normal(kx, (batch, in_features), dtype=jnp.float32)
    # PyTorch Linear weight is (out, in); store its transpose (in, out).
    w_t_f32 = jax.random.normal(kw, (in_features, out_features),
                                dtype=jnp.float32) * 0.02
    lin_b = jax.random.normal(kb, (1, out_features), dtype=jnp.float32) * 0.02
    gamma = (jnp.ones((1, out_features), dtype=jnp.float32)
             + 0.1 * jax.random.normal(kg, (1, out_features), dtype=jnp.float32))
    beta = 0.1 * jax.random.normal(kbt, (1, out_features), dtype=jnp.float32)
    bias = jax.random.normal(kbias, (1,), dtype=jnp.float32)   # bias_shape=(1,)

    # MXU operands in bf16; accumulation and the whole epilogue stay f32.
    x_bf16 = x_f32.astype(jnp.bfloat16)
    w_t_bf16 = w_t_f32.astype(jnp.bfloat16)

    out = fused_forward(x_bf16, w_t_bf16, gamma, beta, bias,
                        eps=bn_eps, divide_value=divide_value, tn=256)
    out = jax.block_until_ready(out)

    ref = reference_forward(x_bf16, w_t_bf16, lin_b, gamma, beta, bias,
                            eps=bn_eps, divide_value=divide_value)
    assert out.shape == (batch, out_features)
    assert jnp.allclose(out, ref, atol=5e-3, rtol=5e-3), "mismatch vs reference"

    print("KERNEL_OK")
</pallas_src>

<mosaic_0001>
module attributes {stable_mosaic.version = 11 : i64} {
  func.func @_fused_kernel(%arg0: i32, %arg1: memref<16x1024xbf16, #tpu.memory_space<vmem>>, %arg2: memref<1024x256xbf16, #tpu.memory_space<vmem>>, %arg3: memref<1x256xf32, #tpu.memory_space<vmem>>, %arg4: memref<1x256xf32, #tpu.memory_space<vmem>>, %arg5: memref<1xf32, #tpu.memory_space<smem>>, %arg6: memref<16x256xf32, #tpu.memory_space<vmem>>) attributes {dimension_semantics = [#tpu.dimension_semantics<parallel>], iteration_bounds = array<i64: 2>, scalar_prefetch = 0 : i64, scratch_operands = 0 : i64, tpu.core_type = #tpu.core_type<tc>, window_params = [{pipeline_mode = #tpu.pipeline_mode<synchronous>, transform_indices = @transform_0, window_bounds = array<i64: 16, 1024>}, {transform_indices = @transform_1, window_bounds = array<i64: 1024, 256>}, {transform_indices = @transform_2, window_bounds = array<i64: 1, 256>}, {transform_indices = @transform_3, window_bounds = array<i64: 1, 256>}, {transform_indices = @transform_4, window_bounds = array<i64: 1>}, {transform_indices = @transform_5, window_bounds = array<i64: 16, 256>}]} {
    %c0 = arith.constant 0 : index
    %c0_0 = arith.constant 0 : index
    %0 = vector.load %arg1[%c0, %c0_0] : memref<16x1024xbf16, #tpu.memory_space<vmem>>, vector<16x1024xbf16>
    %c0_1 = arith.constant 0 : index
    %c0_2 = arith.constant 0 : index
    %1 = vector.load %arg2[%c0_1, %c0_2] : memref<1024x256xbf16, #tpu.memory_space<vmem>>, vector<1024x256xbf16>
    %cst = arith.constant dense<0.000000e+00> : vector<16x256xf32>
    %2 = tpu.matmul %0, %1, %cst {dimension_numbers = #tpu.dot_dimension_numbers<[1], [0], [0], [1], [0, 0, 1, 1], [], []>} : vector<16x1024xbf16>, vector<1024x256xbf16>, vector<16x256xf32> -> vector<16x256xf32>
    %cst_3 = arith.constant dense<0.000000e+00> : vector<256xf32>
    %3 = vector.multi_reduction <add>, %2, %cst_3 [0] : vector<16x256xf32> to vector<256xf32>
    %4 = vector.shape_cast %3 : vector<256xf32> to vector<1x256xf32>
    %cst_4 = arith.constant 1.600000e+01 : f32
    %5 = vector.broadcast %cst_4 : f32 to vector<1x256xf32>
    %6 = arith.divf %4, %5 : vector<1x256xf32>
    %7 = vector.broadcast %6 : vector<1x256xf32> to vector<16x256xf32>
    %8 = arith.subf %2, %7 : vector<16x256xf32>
    %9 = arith.mulf %8, %8 : vector<16x256xf32>
    %cst_5 = arith.constant dense<0.000000e+00> : vector<256xf32>
    %10 = vector.multi_reduction <add>, %9, %cst_5 [0] : vector<16x256xf32> to vector<256xf32>
    %11 = vector.shape_cast %10 : vector<256xf32> to vector<1x256xf32>
    %cst_6 = arith.constant 1.600000e+01 : f32
    %12 = vector.broadcast %cst_6 : f32 to vector<1x256xf32>
    %13 = arith.divf %11, %12 : vector<1x256xf32>
    %c0_7 = arith.constant 0 : index
    %c0_8 = arith.constant 0 : index
    %14 = vector.load %arg3[%c0_7, %c0_8] : memref<1x256xf32, #tpu.memory_space<vmem>>, vector<1x256xf32>
    %cst_9 = arith.constant 9.99999974E-6 : f32
    %15 = vector.broadcast %cst_9 : f32 to vector<1x256xf32>
    %16 = arith.addf %13, %15 : vector<1x256xf32>
    %17 = math.rsqrt %16 : vector<1x256xf32>
    %18 = arith.mulf %14, %17 : vector<1x256xf32>
    %cst_10 = arith.constant 1.000000e+00 : f32
    %19 = vector.broadcast %cst_10 : f32 to vector<1x256xf32>
    %20 = arith.mulf %18, %19 : vector<1x256xf32>
    %c0_11 = arith.constant 0 : index
    %c0_12 = arith.constant 0 : index
    %21 = vector.load %arg4[%c0_11, %c0_12] : memref<1x256xf32, #tpu.memory_space<vmem>>, vector<1x256xf32>
    %c0_13 = arith.constant 0 : index
    %22 = memref.load %arg5[%c0_13] : memref<1xf32, #tpu.memory_space<smem>>
    %23 = vector.broadcast %22 : f32 to vector<1x256xf32>
    %24 = arith.addf %21, %23 : vector<1x256xf32>
    %cst_14 = arith.constant 1.000000e+00 : f32
    %25 = vector.broadcast %cst_14 : f32 to vector<1x256xf32>
    %26 = arith.mulf %24, %25 : vector<1x256xf32>
    %27 = vector.broadcast %20 : vector<1x256xf32> to vector<16x256xf32>
    %28 = arith.mulf %8, %27 : vector<16x256xf32>
    %29 = vector.broadcast %26 : vector<1x256xf32> to vector<16x256xf32>
    %30 = arith.addf %28, %29 : vector<16x256xf32>
    %cst_15 = arith.constant 0.000000e+00 : f32
    %31 = vector.broadcast %cst_15 : f32 to vector<16x256xf32>
    %32 = arith.subf %31, %30 : vector<16x256xf32>
    %33 = math.exp %32 : vector<16x256xf32>
    %cst_16 = arith.constant 1.000000e+00 : f32
    %34 = vector.broadcast %cst_16 : f32 to vector<16x256xf32>
    %35 = arith.addf %34, %33 : vector<16x256xf32>
    %36 = tpu.reciprocal %35 {approx = true} : vector<16x256xf32> -> vector<16x256xf32>
    %37 = arith.mulf %30, %36 : vector<16x256xf32>
    %c0_17 = arith.constant 0 : index
    %c0_18 = arith.constant 0 : index
    %38 = vector.load %arg6[%c0_17, %c0_18] : memref<16x256xf32, #tpu.memory_space<vmem>>, vector<16x256xf32>
    tpu.vector_store %arg6[%c0_17, %c0_18], %37 {strides = array<i32>} : memref<16x256xf32, #tpu.memory_space<vmem>>, vector<16x256xf32>,
    return
  }
  func.func @transform_0(%arg0: i32) -> (i32, i32) {
    %c0_i32 = arith.constant 0 : i32
    %c0_i32_0 = arith.constant 0 : i32
    %c0_i32_1 = arith.constant 0 : i32
    return %c0_i32, %c0_i32_0 : i32, i32
  }
  func.func @transform_1(%arg0: i32) -> (i32, i32) {
    %c0_i32 = arith.constant 0 : i32
    %c0_i32_0 = arith.constant 0 : i32
    return %c0_i32, %arg0 : i32, i32
  }
  func.func @transform_2(%arg0: i32) -> (i32, i32) {
    %c0_i32 = arith.constant 0 : i32
    %c0_i32_0 = arith.constant 0 : i32
    return %c0_i32, %arg0 : i32, i32
  }
  func.func @transform_3(%arg0: i32) -> (i32, i32) {
    %c0_i32 = arith.constant 0 : i32
    %c0_i32_0 = arith.constant 0 : i32
    return %c0_i32, %arg0 : i32, i32
  }
  func.func @transform_4(%arg0: i32) -> i32 {
    %c0_i32 = arith.constant 0 : i32
    %c0_i32_0 = arith.constant 0 : i32
    return %c0_i32 : i32
  }
  func.func @transform_5(%arg0: i32) -> (i32, i32) {
    %c0_i32 = arith.constant 0 : i32
    %c0_i32_0 = arith.constant 0 : i32
    return %c0_i32, %arg0 : i32, i32
  }
}

</mosaic_0001>

<llo_original>
// kernel: tpu_custom_call.1
$region0: #{tpu_custom_call.1}
  #allocation0 [shape = 'u32[]', space=smem, size = 0x4, offset = 0x4, fixed_abs, tag = 'smem constant byte address 0x4 - core index']
  #allocation1 [shape = 'u32[144,128]{1,0:T(1,128)}', space=vmem, size = 0x12000, scoped, tag = 'internal scratch']
  #allocation2 [shape = 'f32[1]{0:T(128)S(6)}', space=smem, size = 0x200, scoped, tag = 'scoped memory for tpu_custom_call.1']
  %s0 = inlined_call_operand.hbm [shape: bf16[16,1024], index: 0, kind: input, shape index: {}]
  %s1 = inlined_call_operand.hbm [shape: bf16[1024,512], index: 1, kind: input, shape index: {}]
  %s2 = inlined_call_operand.vmem [shape: f32[1,512], index: 2, kind: input, shape index: {}]
  %s3 = inlined_call_operand.vmem [shape: f32[1,512], index: 3, kind: input, shape index: {}]
  %s4 = inlined_call_operand.<no memory space> [shape: f32[1], index: 4, kind: input, shape index: {}]
  %s5 = inlined_call_operand.hbm [shape: f32[16,512], index: 5, kind: output, shape index: {}]
  %s6 = sld [smem:[#allocation0]]
  $region61: #{tpu_custom_call.1} parent=0
    _
  %s8 = ssub.s32 1, %s6
  %s9 = scalar_select 0, %s8, %s6
  %10 = sst [smem:[#allocation2]] %s4
  $region1: #{tpu_custom_call.1} parent=0
    #allocation3 [shape = 'u8[32768]{0}', space=vmem, size = 0x8000, scoped, tag = 'input window, operand 0, single buffered']
    #allocation4 [shape = 's32[2]{0}', space=sflag, size = 0x8, scoped, tag = 'scoped memory for tpu_custom_call.1']
    #allocation5 [shape = 's32[2]{0}', space=sflag, size = 0x8, scoped, tag = 'scoped memory for tpu_custom_call.1']
    #allocation6 [shape = 'u8[1048576]{0}', space=vmem, size = 0x100000, scoped, tag = 'input window, operand 1']
    #allocation7 [shape = 's32[2]{0}', space=sflag, size = 0x8, scoped, tag = 'scoped memory for tpu_custom_call.1']
    #allocation8 [shape = 'u8[32768]{0}', space=vmem, size = 0x8000, scoped, tag = 'output window, operand 0']
    %11 = vsyncpa [#allocation4], 0
    %12 = vsyncpa [#allocation7], 0
    %s13 = scalar_lea.sflag [#allocation7], 1
    %14 = vsyncpa %s13, 0
    %15 = vsyncpa [#allocation5], 0
    %s16 = scalar_lea.sflag [#allocation5], 1
    %17 = vsyncpa %s16, 0
    loop: start=0, step=1, limit=4
    $region2: #{tpu_custom_call.1} parent=1 // loop_pre_header
      _
    $region3: #{tpu_custom_call.1} parent=1 // loop_header
      %s19 = sphi 0, %s23
      %p20 = scmp.ge.s32.totalorder %s19, 4
      %s27 = sphi 0, %s27
      %s29 = sphi 0, %s27
      %s30 = sphi 0, %s29
      %s44 = sphi 0, %s30
      %s50 = sphi 0, %s52
      %s53 = sphi 0, %s50
      %s54 = sphi 0, %s53
      %s70 = sphi 0, %s54
      %s76 = sphi 0, %s78
      %s79 = sphi 0, %s76
      %s80 = sphi 0, %s79
      %s96 = sphi 0, %s80
      %s102 = sphi 0, %s104
      %s105 = sphi 0, %s102
      %s106 = sphi 0, %s105
      %s122 = sphi 0, %s106
      %s126 = sphi 0, %s126
      %s128 = sphi 0, %s126
      %s129 = sphi 0, %s128
      %s143 = sphi 0, %s129
      %s149 = sphi 0, %s151
      %s152 = sphi 0, %s149
      %s153 = sphi 0, %s152
      %s169 = sphi 0, %s153
    $region4: #{tpu_custom_call.1} parent=1 // loop_header_branch
      %22 = sbr.rel (%p20) target = $region8
    $region5: #{tpu_custom_call.1} parent=1 // loop_body
      %s24 = ssub.s32 %s19, 1
      %s25 = ssub.s32 %s19, 2
      %s26 = sadd.s32 %s19, 1
      %s28 = sadd.s32 %s27, 1
      %p31 = scmp.eq.s32.totalorder %s19, 1
      %p32 = scmp.ne.s32.totalorder %s27, %s29
      %p33 = scmp.eq.s32.totalorder %s19, 0
      %p34 = por %p32, %p33
      %p35 = scmp.ne.s32.totalorder %s27, %s29
      %p36 = scmp.eq.s32.totalorder %s24, 1
      %p37 = por %p35, %p36
      %p38 = scmp.ne.s32.totalorder %s29, %s30
      %p39 = scmp.eq.s32.totalorder %s24, 0
      %p40 = por %p38, %p39
      %p41 = scmp.ne.s32.totalorder %s29, %s30
      %p42 = scmp.eq.s32.totalorder %s25, 1
      %p43 = por %p41, %p42
      %p45 = scmp.ne.s32.totalorder %s30, %s44
      %p46 = scmp.eq.s32.totalorder %s25, 0
      %p47 = por %p45, %p46
      %s48 = ssub.s32 %s19, %s26
      %p49 = scmp.eq.s32.totalorder %s48, 0
      %s51 = sadd.s32 %s50, 1
      %s52 = scalar_select %p49, %s50, %s51
      %p55 = pneg %p49
      %p56 = scmp.eq.s32.totalorder %s19, 1
      %p57 = por %p55, %p56
      %p58 = scmp.ne.s32.totalorder %s50, %s53
      %p59 = scmp.eq.s32.totalorder %s19, 0
      %p60 = por %p58, %p59
      %p61 = scmp.ne.s32.totalorder %s50, %s53
      %p62 = scmp.eq.s32.totalorder %s24, 1
      %p63 = por %p61, %p62
      %p64 = scmp.ne.s32.totalorder %s53, %s54
      %p65 = scmp.eq.s32.totalorder %s24, 0
      %p66 = por %p64, %p65
      %p67 = scmp.ne.s32.totalorder %s53, %s54
      %p68 = scmp.eq.s32.totalorder %s25, 1
      %p69 = por %p67, %p68
      %p71 = scmp.ne.s32.totalorder %s54, %s70
      %p72 = scmp.eq.s32.totalorder %s25, 0
      %p73 = por %p71, %p72
      %s74 = ssub.s32 %s19, %s26
      %p75 = scmp.eq.s32.totalorder %s74, 0
      %s77 = sadd.s32 %s76, 1
      %s78 = scalar_select %p75, %s76, %s77
      %p81 = pneg %p75
      %p82 = scmp.eq.s32.totalorder %s19, 1
      %p83 = por %p81, %p82
      %p84 = scmp.ne.s32.totalorder %s76, %s79
      %p85 = scmp.eq.s32.totalorder %s19, 0
      %p86 = por %p84, %p85
      %p87 = scmp.ne.s32.totalorder %s76, %s79
      %p88 = scmp.eq.s32.totalorder %s24, 1
      %p89 = por %p87, %p88
      %p90 = scmp.ne.s32.totalorder %s79, %s80
      %p91 = scmp.eq.s32.totalorder %s24, 0
      %p92 = por %p90, %p91
      %p93 = scmp.ne.s32.totalorder %s79, %s80
      %p94 = scmp.eq.s32.totalorder %s25, 1
      %p95 = por %p93, %p94
      %p97 = scmp.ne.s32.totalorder %s80, %s96
      %p98 = scmp.eq.s32.totalorder %s25, 0
      %p99 = por %p97, %p98
      %s100 = ssub.s32 %s19, %s26
      %p101 = scmp.eq.s32.totalorder %s100, 0
      %s103 = sadd.s32 %s102, 1
      %s104 = scalar_select %p101, %s102, %s103
      %p107 = pneg %p101
      %p108 = scmp.eq.s32.totalorder %s19, 1
      %p109 = por %p107, %p108
      %p110 = scmp.ne.s32.totalorder %s102, %s105
      %p111 = scmp.eq.s32.totalorder %s19, 0
      %p112 = por %p110, %p111
      %p113 = scmp.ne.s32.totalorder %s102, %s105
      %p114 = scmp.eq.s32.totalorder %s24, 1
      %p115 = por %p113, %p114
      %p116 = scmp.ne.s32.totalorder %s105, %s106
      %p117 = scmp.eq.s32.totalorder %s24, 0
      %p118 = por %p116, %p117
      %p119 = scmp.ne.s32.totalorder %s105, %s106
      %p120 = scmp.eq.s32.totalorder %s25, 1
      %p121 = por %p119, %p120
      %p123 = scmp.ne.s32.totalorder %s106, %s122
      %p124 = scmp.eq.s32.totalorder %s25, 0
      %p125 = por %p123, %p124
      %s127 = sadd.s32 %s126, 1
      %p130 = scmp.eq.s32.totalorder %s19, 1
      %p131 = scmp.ne.s32.totalorder %s126, %s128
      %p132 = scmp.eq.s32.totalorder %s19, 0
      %p133 = por %p131, %p132
      %p134 = scmp.ne.s32.totalorder %s126, %s128
      %p135 = scmp.eq.s32.totalorder %s24, 1
      %p136 = por %p134, %p135
      %p137 = scmp.ne.s32.totalorder %s128, %s129
      %p138 = scmp.eq.s32.totalorder %s24, 0
      %p139 = por %p137, %p138
      %p140 = scmp.ne.s32.totalorder %s128, %s129
      %p141 = scmp.eq.s32.totalorder %s25, 1
      %p142 = por %p140, %p141
      %p144 = scmp.ne.s32.totalorder %s129, %s143
      %p145 = scmp.eq.s32.totalorder %s25, 0
      %p146 = por %p144, %p145
      %s147 = ssub.s32 %s19, %s26
      %p148 = scmp.eq.s32.totalorder %s147, 0
      %s150 = sadd.s32 %s149, 1
      %s151 = scalar_select %p148, %s149, %s150
      %p154 = pneg %p148
      %p155 = scmp.eq.s32.totalorder %s19, 1
      %p156 = por %p154, %p155
      %p157 = scmp.ne.s32.totalorder %s149, %s152
      %p158 = scmp.eq.s32.totalorder %s19, 0
      %p159 = por %p157, %p158
      %p160 = scmp.ne.s32.totalorder %s149, %s152
      %p161 = scmp.eq.s32.totalorder %s24, 1
      %p162 = por %p160, %p161
      %p163 = scmp.ne.s32.totalorder %s152, %s153
      %p164 = scmp.eq.s32.totalorder %s24, 0
      %p165 = por %p163, %p164
      %p166 = scmp.ne.s32.totalorder %s152, %s153
      %p167 = scmp.eq.s32.totalorder %s25, 1
      %p168 = por %p166, %p167
      %p170 = scmp.ne.s32.totalorder %s153, %s169
      %p171 = scmp.eq.s32.totalorder %s25, 0
      %p172 = por %p170, %p171
      %p173 = scmp.le.s32.totalorder 1, %s19
      %p174 = scmp.lt.s32.totalorder %s19, 3
      %p175 = pnand %p173, %p174
      %p176 = pneg %p175
      // Predicated region
      $region9: #{tpu_custom_call.1} parent=5 // pred_check
        _
      $region10: #{tpu_custom_call.1} parent=5 // pred_check_branch
        %178 = sbr.rel (%p175) target = $region12
      $region11: #{tpu_custom_call.1} parent=5 // pred_region
        %s179 = ssub.s32 %s19, 1
        // Predicated region
        $region13: #{tpu_custom_call.1} parent=11 // pred_check
          %p180 = pneg %p40
        $region14: #{tpu_custom_call.1} parent=11 // pred_check_branch
          %182 = sbr.rel (%p180) target = $region16
        $region15: #{tpu_custom_call.1} parent=11 // pred_region
          %s184 = ssub.s32 1024, 1024
          %185 = vsyncadd [#allocation4], %s184
          %s186 = sshll.u32 [#allocation3], 4
          %s187 = int_to_ptr.vmem [resolvable:$true] %s186
          %192 = dma.hbm_to_vmem [thread:$0]  %s0, 1024, %s187, [#allocation4], 512, 512, 32
        $region16: #{tpu_custom_call.1} parent=11 // pred_fallthru
          _
        // Predicated region
        $region17: #{tpu_custom_call.1} parent=11 // pred_check
          %p193 = pneg %p139
        $region18: #{tpu_custom_call.1} parent=11 // pred_check_branch
          %195 = sbr.rel (%p193) target = $region20
        $region19: #{tpu_custom_call.1} parent=11 // pred_region
          _
        $region20: #{tpu_custom_call.1} parent=11 // pred_fallthru
          _
      $region12: #{tpu_custom_call.1} parent=5 // pred_fallthru
        _
      %p196 = scmp.lt.s32.totalorder %s19, 2
      // Predicated region
      $region21: #{tpu_custom_call.1} parent=5 // pred_check
        %p197 = pneg %p196
      $region22: #{tpu_custom_call.1} parent=5 // pred_check_branch
        %199 = sbr.rel (%p197) target = $region24
      $region23: #{tpu_custom_call.1} parent=5 // pred_region
        // Predicated region
        $region25: #{tpu_custom_call.1} parent=23 // pred_check
          %p200 = pneg %p60
        $region26: #{tpu_custom_call.1} parent=23 // pred_check_branch
          %202 = sbr.rel (%p200) target = $region28
        $region27: #{tpu_custom_call.1} parent=23 // pred_region
          %s203 = sand.u32 %s50, 1
          %s204 = scalar_lea.sflag [#allocation7], %s203
          %s205 = sand.u32 %s50, 1
          %s206 = smul.addr %s205, 1024
          %s207 = scalar_lea.vmem [#allocation6], %s206
          %s208 = smul.u32 2, %s19
          %s210 = ssub.s32 16384, 16384
          %211 = vsyncadd %s204, %s210
          %s212 = smul.addr %s208, 64
          %s213 = scalar_lea.hbm %s1, %s212
          %s214 = sshll.u32 %s207, 4
          %s215 = int_to_ptr.vmem [resolvable:$true] %s214
          %220 = dma.hbm_to_vmem [thread:$0]  %s213, 16384, %s215, %s204, 256, 128, 8
        $region28: #{tpu_custom_call.1} parent=23 // pred_fallthru
          _
        // Predicated region
        $region29: #{tpu_custom_call.1} parent=23 // pred_check
          %p221 = pneg %p86
        $region30: #{tpu_custom_call.1} parent=23 // pred_check_branch
          %223 = sbr.rel (%p221) target = $region32
        $region31: #{tpu_custom_call.1} parent=23 // pred_region
          %s224 = smul.u32 2, %s19
          %p225 = scmp.lt.s32.totalorder %s224, 3
          %s226 = scalar_select %p225, %s224, 3
          %s227 = scalar_lea.vmem %s2, %s226
          %s228 = smul.u32 2, %s19
        $region32: #{tpu_custom_call.1} parent=23 // pred_fallthru
          _
        // Predicated region
        $region33: #{tpu_custom_call.1} parent=23 // pred_check
          %p229 = pneg %p112
        $region34: #{tpu_custom_call.1} parent=23 // pred_check_branch
          %231 = sbr.rel (%p229) target = $region36
        $region35: #{tpu_custom_call.1} parent=23 // pred_region
          %s232 = smul.u32 2, %s19
          %p233 = scmp.lt.s32.totalorder %s232, 3
          %s234 = scalar_select %p233, %s232, 3
          %s235 = scalar_lea.vmem %s3, %s234
          %s236 = smul.u32 2, %s19
        $region36: #{tpu_custom_call.1} parent=23 // pred_fallthru
          _
      $region24: #{tpu_custom_call.1} parent=5 // pred_fallthru
        _
      %p237 = scmp.le.s32.totalorder 1, %s19
      %p238 = scmp.lt.s32.totalorder %s19, 3
      %p239 = pnand %p237, %p238
      %p240 = pneg %p239
      // Predicated region
      $region37: #{tpu_custom_call.1} parent=5 // pred_check
        _
      $region38: #{tpu_custom_call.1} parent=5 // pred_check_branch
        %242 = sbr.rel (%p239) target = $region40
      $region39: #{tpu_custom_call.1} parent=5 // pred_region
        %s243 = ssub.s32 %s19, 1
        // Predicated region
        $region41: #{tpu_custom_call.1} parent=39 // pred_check
          %p244 = pneg %p40
        $region42: #{tpu_custom_call.1} parent=39 // pred_check_branch
          %246 = sbr.rel (%p244) target = $region44
        $region43: #{tpu_custom_call.1} parent=39 // pred_region
          %247 = dma.done [#allocation4], 1024
        $region44: #{tpu_custom_call.1} parent=39 // pred_fallthru
          _
        %s248 = sand.u32 %s53, 1
        %s249 = scalar_lea.sflag [#allocation7], %s248
        %s250 = sand.u32 %s53, 1
        %s251 = smul.addr %s250, 1024
        %s252 = scalar_lea.vmem [#allocation6], %s251
        // Predicated region
        $region45: #{tpu_custom_call.1} parent=39 // pred_check
          %p253 = pneg %p66
        $region46: #{tpu_custom_call.1} parent=39 // pred_check_branch
          %255 = sbr.rel (%p253) target = $region48
        $region47: #{tpu_custom_call.1} parent=39 // pred_region
          %256 = dma.done %s249, 16384
        $region48: #{tpu_custom_call.1} parent=39 // pred_fallthru
          _
        %p257 = pneg %p40
        %p258 = pneg %p37
        %s259 = sand.u32 %s53, 1
        %s260 = scalar_lea.sflag [#allocation7], %s259
        %s261 = sand.u32 %s53, 1
        %s262 = smul.addr %s261, 1024
        %s263 = scalar_lea.vmem [#allocation6], %s262
        %p264 = pneg %p66
        %p265 = pneg %p63
        %s266 = smul.u32 2, %s24
        %p267 = scmp.lt.s32.totalorder %s266, 3
        %s268 = scalar_select %p267, %s266, 3
        %s269 = scalar_lea.vmem %s2, %s268
        %p270 = pneg %p92
        %p271 = pneg %p89
        %s272 = smul.u32 2, %s24
        %p273 = scmp.lt.s32.totalorder %s272, 3
        %s274 = scalar_select %p273, %s272, 3
        %s275 = scalar_lea.vmem %s3, %s274
        %p276 = pneg %p118
        %p277 = pneg %p115
        %p278 = pneg %p139
        %p279 = pneg %p136
        %p280 = pneg %p165
        %p281 = pneg %p162
        %s282 = sand.u32 %s152, 1
        %s283 = scalar_lea.sflag [#allocation5], %s282
        %s284 = sand.u32 %s152, 1
        %s285 = smul.addr %s284, 32
        %s286 = scalar_lea.vmem [#allocation8], %s285
        %s287 = smul.u32 2, %s24
        %s288 = smul.u32 2, %s24
        %p289 = scmp.lt.s32.totalorder %s288, 3
        %s290 = scalar_select %p289, %s288, 3
        %s291 = scalar_lea.vmem %s2, %s290
        %s292 = smul.u32 2, %s24
        %s293 = smul.u32 2, %s24
        %p294 = scmp.lt.s32.totalorder %s293, 3
        %s295 = scalar_select %p294, %s293, 3
        %s296 = scalar_lea.vmem %s3, %s295
        %s297 = smul.u32 2, %s24
        %s298 = smul.u32 2, %s24
        %v299 = vld [vmem:[#allocation3] sm:$0xff]
        %v300 = vld [vmem:[#allocation3 + $0x8] sm:$0xff]
        %v301 = vld [vmem:[#allocation3 + $0x10] sm:$0xff]
        %v302 = vld [vmem:[#allocation3 + $0x18] sm:$0xff]
        %v303 = vld [vmem:[#allocation3 + $0x20] sm:$0xff]
        %v304 = vld [vmem:[#allocation3 + $0x28] sm:$0xff]
        %v305 = vld [vmem:[#allocation3 + $0x30] sm:$0xff]
        %v306 = vld [vmem:[#allocation3 + $0x38] sm:$0xff]
        %v307 = vld [vmem:[%s252] sm:$0xff]
        %v308 = vld [vmem:[%s252 + $0x8] sm:$0xff]
        %v309 = vld [vmem:[%s252 + $0x10] sm:$0xff]
        %v310 = vld [vmem:[%s252 + $0x18] sm:$0xff]
        %v311 = vld [vmem:[%s252 + $0x20] sm:$0xff]
        %v312 = vld [vmem:[%s252 + $0x28] sm:$0xff]
        %v313 = vld [vmem:[%s252 + $0x30] sm:$0xff]
        %v314 = vld [vmem:[%s252 + $0x38] sm:$0xff]
        %v315 = vld [vmem:[%s252 + $0x40] sm:$0xff]
        %v316 = vld [vmem:[%s252 + $0x48] sm:$0xff]
        %v317 = vld [vmem:[%s252 + $0x50] sm:$0xff]
        %v318 = vld [vmem:[%s252 + $0x58] sm:$0xff]
        %v319 = vld [vmem:[%s252 + $0x60] sm:$0xff]
        %v320 = vld [vmem:[%s252 + $0x68] sm:$0xff]
        %v321 = vld [vmem:[%s252 + $0x70] sm:$0xff]
        %v322 = vld [vmem:[%s252 + $0x78] sm:$0xff]
        %v323 = vld [vmem:[%s252 + $0x80] sm:$0xff]
        %v324 = vld [vmem:[%s252 + $0x88] sm:$0xff]
        %v325 = vld [vmem:[%s252 + $0x90] sm:$0xff]
        %v326 = vld [vmem:[%s252 + $0x98] sm:$0xff]
        %v327 = vld [vmem:[%s252 + $0xa0] sm:$0xff]
        %v328 = vld [vmem:[%s252 + $0xa8] sm:$0xff]
        %v329 = vld [vmem:[%s252 + $0xb0] sm:$0xff]
        %v330 = vld [vmem:[%s252 + $0xb8] sm:$0xff]
        %v331 = vld [vmem:[%s252 + $0xc0] sm:$0xff]
        %v332 = vld [vmem:[%s252 + $0xc8] sm:$0xff]
        %v333 = vld [vmem:[%s252 + $0xd0] sm:$0xff]
        %v334 = vld [vmem:[%s252 + $0xd8] sm:$0xff]
        %v335 = vld [vmem:[%s252 + $0xe0] sm:$0xff]
        %v336 = vld [vmem:[%s252 + $0xe8] sm:$0xff]
        %v337 = vld [vmem:[%s252 + $0xf0] sm:$0xff]
        %v338 = vld [vmem:[%s252 + $0xf8] sm:$0xff]
        %v339 = vld [vmem:[%s252 + $0x100] sm:$0xff]
        %v340 = vld [vmem:[%s252 + $0x108] sm:$0xff]
        %v341 = vld [vmem:[%s252 + $0x110] sm:$0xff]
        %v342 = vld [vmem:[%s252 + $0x118] sm:$0xff]
        %v343 = vld [vmem:[%s252 + $0x120] sm:$0xff]
        %v344 = vld [vmem:[%s252 + $0x128] sm:$0xff]
        %v345 = vld [vmem:[%s252 + $0x130] sm:$0xff]
        %v346 = vld [vmem:[%s252 + $0x138] sm:$0xff]
        %v347 = vld [vmem:[%s252 + $0x140] sm:$0xff]
        %v348 = vld [vmem:[%s252 + $0x148] sm:$0xff]
        %v349 = vld [vmem:[%s252 + $0x150] sm:$0xff]
        %v350 = vld [vmem:[%s252 + $0x158] sm:$0xff]
        %v351 = vld [vmem:[%s252 + $0x160] sm:$0xff]
        %v352 = vld [vmem:[%s252 + $0x168] sm:$0xff]
        %v353 = vld [vmem:[%s252 + $0x170] sm:$0xff]
        %v354 = vld [vmem:[%s252 + $0x178] sm:$0xff]
        %v355 = vld [vmem:[%s252 + $0x180] sm:$0xff]
        %v356 = vld [vmem:[%s252 + $0x188] sm:$0xff]
        %v357 = vld [vmem:[%s252 + $0x190] sm:$0xff]
        %v358 = vld [vmem:[%s252 + $0x198] sm:$0xff]
        %v359 = vld [vmem:[%s252 + $0x1a0] sm:$0xff]
        %v360 = vld [vmem:[%s252 + $0x1a8] sm:$0xff]
        %v361 = vld [vmem:[%s252 + $0x1b0] sm:$0xff]
        %v362 = vld [vmem:[%s252 + $0x1b8] sm:$0xff]
        %v363 = vld [vmem:[%s252 + $0x1c0] sm:$0xff]
        %v364 = vld [vmem:[%s252 + $0x1c8] sm:$0xff]
        %v365 = vld [vmem:[%s252 + $0x1d0] sm:$0xff]
        %v366 = vld [vmem:[%s252 + $0x1d8] sm:$0xff]
        %v367 = vld [vmem:[%s252 + $0x1e0] sm:$0xff]
        %v368 = vld [vmem:[%s252 + $0x1e8] sm:$0xff]
        %v369 = vld [vmem:[%s252 + $0x1f0] sm:$0xff]
        %v370 = vld [vmem:[%s252 + $0x1f8] sm:$0xff]
        %v371 = vld [vmem:[%s252 + $0x200] sm:$0xff]
        %v372 = vld [vmem:[%s252 + $0x208] sm:$0xff]
        %v373 = vld [vmem:[%s252 + $0x210] sm:$0xff]
        %v374 = vld [vmem:[%s252 + $0x218] sm:$0xff]
        %v375 = vld [vmem:[%s252 + $0x220] sm:$0xff]
        %v376 = vld [vmem:[%s252 + $0x228] sm:$0xff]
        %v377 = vld [vmem:[%s252 + $0x230] sm:$0xff]
        %v378 = vld [vmem:[%s252 + $0x238] sm:$0xff]
        %v379 = vld [vmem:[%s252 + $0x240] sm:$0xff]
        %v380 = vld [vmem:[%s252 + $0x248] sm:$0xff]
        %v381 = vld [vmem:[%s252 + $0x250] sm:$0xff]
        %v382 = vld [vmem:[%s252 + $0x258] sm:$0xff]
        %v383 = vld [vmem:[%s252 + $0x260] sm:$0xff]
        %v384 = vld [vmem:[%s252 + $0x268] sm:$0xff]
        %v385 = vld [vmem:[%s252 + $0x270] sm:$0xff]
        %v386 = vld [vmem:[%s252 + $0x278] sm:$0xff]
        %v387 = vld [vmem:[%s252 + $0x280] sm:$0xff]
        %v388 = vld [vmem:[%s252 + $0x288] sm:$0xff]
        %v389 = vld [vmem:[%s252 + $0x290] sm:$0xff]
        %v390 = vld [vmem:[%s252 + $0x298] sm:$0xff]
        %v391 = vld [vmem:[%s252 + $0x2a0] sm:$0xff]
        %v392 = vld [vmem:[%s252 + $0x2a8] sm:$0xff]
        %v393 = vld [vmem:[%s252 + $0x2b0] sm:$0xff]
        %v394 = vld [vmem:[%s252 + $0x2b8] sm:$0xff]
        %v395 = vld [vmem:[%s252 + $0x2c0] sm:$0xff]
        %v396 = vld [vmem:[%s252 + $0x2c8] sm:$0xff]
        %v397 = vld [vmem:[%s252 + $0x2d0] sm:$0xff]
        %v398 = vld [vmem:[%s252 + $0x2d8] sm:$0xff]
        %v399 = vld [vmem:[%s252 + $0x2e0] sm:$0xff]
        %v400 = vld [vmem:[%s252 + $0x2e8] sm:$0xff]
        %v401 = vld [vmem:[%s252 + $0x2f0] sm:$0xff]
        %v402 = vld [vmem:[%s252 + $0x2f8] sm:$0xff]
        %v403 = vld [vmem:[%s252 + $0x300] sm:$0xff]
        %v404 = vld [vmem:[%s252 + $0x308] sm:$0xff]
        %v405 = vld [vmem:[%s252 + $0x310] sm:$0xff]
        %v406 = vld [vmem:[%s252 + $0x318] sm:$0xff]
        %v407 = vld [vmem:[%s252 + $0x320] sm:$0xff]
        %v408 = vld [vmem:[%s252 + $0x328] sm:$0xff]
        %v409 = vld [vmem:[%s252 + $0x330] sm:$0xff]
        %v410 = vld [vmem:[%s252 + $0x338] sm:$0xff]
        %v411 = vld [vmem:[%s252 + $0x340] sm:$0xff]
        %v412 = vld [vmem:[%s252 + $0x348] sm:$0xff]
        %v413 = vld [vmem:[%s252 + $0x350] sm:$0xff]
        %v414 = vld [vmem:[%s252 + $0x358] sm:$0xff]
        %v415 = vld [vmem:[%s252 + $0x360] sm:$0xff]
        %v416 = vld [vmem:[%s252 + $0x368] sm:$0xff]
        %v417 = vld [vmem:[%s252 + $0x370] sm:$0xff]
        %v418 = vld [vmem:[%s252 + $0x378] sm:$0xff]
        %v419 = vld [vmem:[%s252 + $0x380] sm:$0xff]
        %v420 = vld [vmem:[%s252 + $0x388] sm:$0xff]
        %v421 = vld [vmem:[%s252 + $0x390] sm:$0xff]
        %v422 = vld [vmem:[%s252 + $0x398] sm:$0xff]
        %v423 = vld [vmem:[%s252 + $0x3a0] sm:$0xff]
        %v424 = vld [vmem:[%s252 + $0x3a8] sm:$0xff]
        %v425 = vld [vmem:[%s252 + $0x3b0] sm:$0xff]
        %v426 = vld [vmem:[%s252 + $0x3b8] sm:$0xff]
        %v427 = vld [vmem:[%s252 + $0x3c0] sm:$0xff]
        %v428 = vld [vmem:[%s252 + $0x3c8] sm:$0xff]
        %v429 = vld [vmem:[%s252 + $0x3d0] sm:$0xff]
        %v430 = vld [vmem:[%s252 + $0x3d8] sm:$0xff]
        %v431 = vld [vmem:[%s252 + $0x3e0] sm:$0xff]
        %v432 = vld [vmem:[%s252 + $0x3e8] sm:$0xff]
        %v433 = vld [vmem:[%s252 + $0x3f0] sm:$0xff]
        %v434 = vld [vmem:[%s252 + $0x3f8] sm:$0xff]
        %v443 = vunpack.c.l.b16 %v299
        %v444 = vunpack.c.h.b16 %v299
        %v445 = vunpack.c.l.b16 %v300
        %v446 = vunpack.c.h.b16 %v300
        %v447 = vunpack.c.l.b16 %v301
        %v448 = vunpack.c.h.b16 %v301
        %v449 = vunpack.c.l.b16 %v302
        %v450 = vunpack.c.h.b16 %v302
        %v451 = vunpack.c.l.b16 %v303
        %v452 = vunpack.c.h.b16 %v303
        %v453 = vunpack.c.l.b16 %v304
        %v454 = vunpack.c.h.b16 %v304
        %v455 = vunpack.c.l.b16 %v305
        %v456 = vunpack.c.h.b16 %v305
        %v457 = vunpack.c.l.b16 %v306
        %v458 = vunpack.c.h.b16 %v306
        %v459 = vpack.c.b16 %v451, %v443
        %v460 = vpack.c.b16 %v452, %v444
        %v461 = vpack.c.b16 %v453, %v445
        %v462 = vpack.c.b16 %v454, %v446
        %v463 = vpack.c.b16 %v455, %v447
        %v464 = vpack.c.b16 %v456, %v448
        %v465 = vpack.c.b16 %v457, %v449
        %v466 = vpack.c.b16 %v458, %v450
        %v603 = vunpack.c.l.b16 %v307
        %v604 = vunpack.c.h.b16 %v307
        %v605 = vunpack.c.l.b16 %v308
        %v606 = vunpack.c.h.b16 %v308
        %v607 = vunpack.c.l.b16 %v309
        %v608 = vunpack.c.h.b16 %v309
        %v609 = vunpack.c.l.b16 %v310
        %v610 = vunpack.c.h.b16 %v310
        %v611 = vunpack.c.l.b16 %v311
        %v612 = vunpack.c.h.b16 %v311
        %v613 = vunpack.c.l.b16 %v312
        %v614 = vunpack.c.h.b16 %v312
        %v615 = vunpack.c.l.b16 %v313
        %v616 = vunpack.c.h.b16 %v313
        %v617 = vunpack.c.l.b16 %v314
        %v618 = vunpack.c.h.b16 %v314
        %v619 = vunpack.c.l.b16 %v315
        %v620 = vunpack.c.h.b16 %v315
        %v621 = vunpack.c.l.b16 %v316
        %v622 = vunpack.c.h.b16 %v316
        %v623 = vunpack.c.l.b16 %v317
        %v624 = vunpack.c.h.b16 %v317
        %v625 = vunpack.c.l.b16 %v318
        %v626 = vunpack.c.h.b16 %v318
        %v627 = vunpack.c.l.b16 %v319
        %v628 = vunpack.c.h.b16 %v319
        %v629 = vunpack.c.l.b16 %v320
        %v630 = vunpack.c.h.b16 %v320
        %v631 = vunpack.c.l.b16 %v321
        %v632 = vunpack.c.h.b16 %v321
        %v633 = vunpack.c.l.b16 %v322
        %v634 = vunpack.c.h.b16 %v322
        %v635 = vunpack.c.l.b16 %v323
        %v636 = vunpack.c.h.b16 %v323
        %v637 = vunpack.c.l.b16 %v324
        %v638 = vunpack.c.h.b16 %v324
        %v639 = vunpack.c.l.b16 %v325
        %v640 = vunpack.c.h.b16 %v325
        %v641 = vunpack.c.l.b16 %v326
        %v642 = vunpack.c.h.b16 %v326
        %v643 = vunpack.c.l.b16 %v327
        %v644 = vunpack.c.h.b16 %v327
        %v645 = vunpack.c.l.b16 %v328
        %v646 = vunpack.c.h.b16 %v328
        %v647 = vunpack.c.l.b16 %v329
        %v648 = vunpack.c.h.b16 %v329
        %v649 = vunpack.c.l.b16 %v330
        %v650 = vunpack.c.h.b16 %v330
        %v651 = vunpack.c.l.b16 %v331
        %v652 = vunpack.c.h.b16 %v331
        %v653 = vunpack.c.l.b16 %v332
        %v654 = vunpack.c.h.b16 %v332
        %v655 = vunpack.c.l.b16 %v333
        %v656 = vunpack.c.h.b16 %v333
        %v657 = vunpack.c.l.b16 %v334
        %v658 = vunpack.c.h.b16 %v334
        %v659 = vunpack.c.l.b16 %v335
        %v660 = vunpack.c.h.b16 %v335
        %v661 = vunpack.c.l.b16 %v336
        %v662 = vunpack.c.h.b16 %v336
        %v663 = vunpack.c.l.b16 %v337
        %v664 = vunpack.c.h.b16 %v337
        %v665 = vunpack.c.l.b16 %v338
        %v666 = vunpack.c.h.b16 %v338
        %v667 = vunpack.c.l.b16 %v339
        %v668 = vunpack.c.h.b16 %v339
        %v669 = vunpack.c.l.b16 %v340
        %v670 = vunpack.c.h.b16 %v340
        %v671 = vunpack.c.l.b16 %v341
        %v672 = vunpack.c.h.b16 %v341
        %v673 = vunpack.c.l.b16 %v342
        %v674 = vunpack.c.h.b16 %v342
        %v675 = vunpack.c.l.b16 %v343
        %v676 = vunpack.c.h.b16 %v343
        %v677 = vunpack.c.l.b16 %v344
        %v678 = vunpack.c.h.b16 %v344
        %v679 = vunpack.c.l.b16 %v345
        %v680 = vunpack.c.h.b16 %v345
        %v681 = vunpack.c.l.b16 %v346
        %v682 = vunpack.c.h.b16 %v346
        %v683 = vunpack.c.l.b16 %v347
        %v684 = vunpack.c.h.b16 %v347
        %v685 = vunpack.c.l.b16 %v348
        %v686 = vunpack.c.h.b16 %v348
        %v687 = vunpack.c.l.b16 %v349
        %v688 = vunpack.c.h.b16 %v349
        %v689 = vunpack.c.l.b16 %v350
        %v690 = vunpack.c.h.b16 %v350
        %v691 = vunpack.c.l.b16 %v351
        %v692 = vunpack.c.h.b16 %v351
        %v693 = vunpack.c.l.b16 %v352
        %v694 = vunpack.c.h.b16 %v352
        %v695 = vunpack.c.l.b16 %v353
        %v696 = vunpack.c.h.b16 %v353
        %v697 = vunpack.c.l.b16 %v354
        %v698 = vunpack.c.h.b16 %v354
        %v699 = vunpack.c.l.b16 %v355
        %v700 = vunpack.c.h.b16 %v355
        %v701 = vunpack.c.l.b16 %v356
        %v702 = vunpack.c.h.b16 %v356
        %v703 = vunpack.c.l.b16 %v357
        %v704 = vunpack.c.h.b16 %v357
        %v705 = vunpack.c.l.b16 %v358
        %v706 = vunpack.c.h.b16 %v358
        %v707 = vunpack.c.l.b16 %v359
        %v708 = vunpack.c.h.b16 %v359
        %v709 = vunpack.c.l.b16 %v360
        %v710 = vunpack.c.h.b16 %v360
        %v711 = vunpack.c.l.b16 %v361
        %v712 = vunpack.c.h.b16 %v361
        %v713 = vunpack.c.l.b16 %v362
        %v714 = vunpack.c.h.b16 %v362
        %v715 = vunpack.c.l.b16 %v363
        %v716 = vunpack.c.h.b16 %v363
        %v717 = vunpack.c.l.b16 %v364
        %v718 = vunpack.c.h.b16 %v364
        %v719 = vunpack.c.l.b16 %v365
        %v720 = vunpack.c.h.b16 %v365
        %v721 = vunpack.c.l.b16 %v366
        %v722 = vunpack.c.h.b16 %v366
        %v723 = vunpack.c.l.b16 %v367
        %v724 = vunpack.c.h.b16 %v367
        %v725 = vunpack.c.l.b16 %v368
        %v726 = vunpack.c.h.b16 %v368
        %v727 = vunpack.c.l.b16 %v369
        %v728 = vunpack.c.h.b16 %v369
        %v729 = vunpack.c.l.b16 %v370
        %v730 = vunpack.c.h.b16 %v370
        %v731 = vunpack.c.l.b16 %v371
        %v732 = vunpack.c.h.b16 %v371
        %v733 = vunpack.c.l.b16 %v372
        %v734 = vunpack.c.h.b16 %v372
        %v735 = vunpack.c.l.b16 %v373
        %v736 = vunpack.c.h.b16 %v373
        %v737 = vunpack.c.l.b16 %v374
        %v738 = vunpack.c.h.b16 %v374
        %v739 = vunpack.c.l.b16 %v375
        %v740 = vunpack.c.h.b16 %v375
        %v741 = vunpack.c.l.b16 %v376
        %v742 = vunpack.c.h.b16 %v376
        %v743 = vunpack.c.l.b16 %v377
        %v744 = vunpack.c.h.b16 %v377
        %v745 = vunpack.c.l.b16 %v378
        %v746 = vunpack.c.h.b16 %v378
        %v747 = vunpack.c.l.b16 %v379
        %v748 = vunpack.c.h.b16 %v379
        %v749 = vunpack.c.l.b16 %v380
        %v750 = vunpack.c.h.b16 %v380
        %v751 = vunpack.c.l.b16 %v381
        %v752 = vunpack.c.h.b16 %v381
        %v753 = vunpack.c.l.b16 %v382
        %v754 = vunpack.c.h.b16 %v382
        %v755 = vunpack.c.l.b16 %v383
        %v756 = vunpack.c.h.b16 %v383
        %v757 = vunpack.c.l.b16 %v384
        %v758 = vunpack.c.h.b16 %v384
        %v759 = vunpack.c.l.b16 %v385
        %v760 = vunpack.c.h.b16 %v385
        %v761 = vunpack.c.l.b16 %v386
        %v762 = vunpack.c.h.b16 %v386
        %v763 = vunpack.c.l.b16 %v387
        %v764 = vunpack.c.h.b16 %v387
        %v765 = vunpack.c.l.b16 %v388
        %v766 = vunpack.c.h.b16 %v388
        %v767 = vunpack.c.l.b16 %v389
        %v768 = vunpack.c.h.b16 %v389
        %v769 = vunpack.c.l.b16 %v390
        %v770 = vunpack.c.h.b16 %v390
        %v771 = vunpack.c.l.b16 %v391
        %v772 = vunpack.c.h.b16 %v391
        %v773 = vunpack.c.l.b16 %v392
        %v774 = vunpack.c.h.b16 %v392
        %v775 = vunpack.c.l.b16 %v393
        %v776 = vunpack.c.h.b16 %v393
        %v777 = vunpack.c.l.b16 %v394
        %v778 = vunpack.c.h.b16 %v394
        %v779 = vunpack.c.l.b16 %v395
        %v780 = vunpack.c.h.b16 %v395
        %v781 = vunpack.c.l.b16 %v396
        %v782 = vunpack.c.h.b16 %v396
        %v783 = vunpack.c.l.b16 %v397
        %v784 = vunpack.c.h.b16 %v397
        %v785 = vunpack.c.l.b16 %v398
        %v786 = vunpack.c.h.b16 %v398
        %v787 = vunpack.c.l.b16 %v399
        %v788 = vunpack.c.h.b16 %v399
        %v789 = vunpack.c.l.b16 %v400
        %v790 = vunpack.c.h.b16 %v400
        %v791 = vunpack.c.l.b16 %v401
        %v792 = vunpack.c.h.b16 %v401
        %v793 = vunpack.c.l.b16 %v402
        %v794 = vunpack.c.h.b16 %v402
        %v795 = vunpack.c.l.b16 %v403
        %v796 = vunpack.c.h.b16 %v403
        %v797 = vunpack.c.l.b16 %v404
        %v798 = vunpack.c.h.b16 %v404
        %v799 = vunpack.c.l.b16 %v405
        %v800 = vunpack.c.h.b16 %v405
        %v801 = vunpack.c.l.b16 %v406
        %v802 = vunpack.c.h.b16 %v406
        %v803 = vunpack.c.l.b16 %v407
        %v804 = vunpack.c.h.b16 %v407
        %v805 = vunpack.c.l.b16 %v408
        %v806 = vunpack.c.h.b16 %v408
        %v807 = vunpack.c.l.b16 %v409
        %v808 = vunpack.c.h.b16 %v409
        %v809 = vunpack.c.l.b16 %v410
        %v810 = vunpack.c.h.b16 %v410
        %v811 = vunpack.c.l.b16 %v411
        %v812 = vunpack.c.h.b16 %v411
        %v813 = vunpack.c.l.b16 %v412
        %v814 = vunpack.c.h.b16 %v412
        %v815 = vunpack.c.l.b16 %v413
        %v816 = vunpack.c.h.b16 %v413
        %v817 = vunpack.c.l.b16 %v414
        %v818 = vunpack.c.h.b16 %v414
        %v819 = vunpack.c.l.b16 %v415
        %v820 = vunpack.c.h.b16 %v415
        %v821 = vunpack.c.l.b16 %v416
        %v822 = vunpack.c.h.b16 %v416
        %v823 = vunpack.c.l.b16 %v417
        %v824 = vunpack.c.h.b16 %v417
        %v825 = vunpack.c.l.b16 %v418
        %v826 = vunpack.c.h.b16 %v418
        %v827 = vunpack.c.l.b16 %v419
        %v828 = vunpack.c.h.b16 %v419
        %v829 = vunpack.c.l.b16 %v420
        %v830 = vunpack.c.h.b16 %v420
        %v831 = vunpack.c.l.b16 %v421
        %v832 = vunpack.c.h.b16 %v421
        %v833 = vunpack.c.l.b16 %v422
        %v834 = vunpack.c.h.b16 %v422
        %v835 = vunpack.c.l.b16 %v423
        %v836 = vunpack.c.h.b16 %v423
        %v837 = vunpack.c.l.b16 %v424
        %v838 = vunpack.c.h.b16 %v424
        %v839 = vunpack.c.l.b16 %v425
        %v840 = vunpack.c.h.b16 %v425
        %v841 = vunpack.c.l.b16 %v426
        %v842 = vunpack.c.h.b16 %v426
        %v843 = vunpack.c.l.b16 %v427
        %v844 = vunpack.c.h.b16 %v427
        %v845 = vunpack.c.l.b16 %v428
        %v846 = vunpack.c.h.b16 %v428
        %v847 = vunpack.c.l.b16 %v429
        %v848 = vunpack.c.h.b16 %v429
        %v849 = vunpack.c.l.b16 %v430
        %v850 = vunpack.c.h.b16 %v430
        %v851 = vunpack.c.l.b16 %v431
        %v852 = vunpack.c.h.b16 %v431
        %v853 = vunpack.c.l.b16 %v432
        %v854 = vunpack.c.h.b16 %v432
        %v855 = vunpack.c.l.b16 %v433
        %v856 = vunpack.c.h.b16 %v433
        %v857 = vunpack.c.l.b16 %v434
        %v858 = vunpack.c.h.b16 %v434
        %v859 = vpack.c.b16 %v605, %v603
        %v860 = vpack.c.b16 %v606, %v604
        %v861 = vpack.c.b16 %v609, %v607
        %v862 = vpack.c.b16 %v610, %v608
        %v863 = vpack.c.b16 %v613, %v611
        %v864 = vpack.c.b16 %v614, %v612
        %v865 = vpack.c.b16 %v617, %v615
        %v866 = vpack.c.b16 %v618, %v616
        %v867 = vpack.c.b16 %v621, %v619
        %v868 = vpack.c.b16 %v622, %v620
        %v869 = vpack.c.b16 %v625, %v623
        %v870 = vpack.c.b16 %v626, %v624
        %v871 = vpack.c.b16 %v629, %v627
        %v872 = vpack.c.b16 %v630, %v628
        %v873 = vpack.c.b16 %v633, %v631
        %v874 = vpack.c.b16 %v634, %v632
        %v875 = vpack.c.b16 %v637, %v635
        %v876 = vpack.c.b16 %v638, %v636
        %v877 = vpack.c.b16 %v641, %v639
        %v878 = vpack.c.b16 %v642, %v640
        %v879 = vpack.c.b16 %v645, %v643
        %v880 = vpack.c.b16 %v646, %v644
        %v881 = vpack.c.b16 %v649, %v647
        %v882 = vpack.c.b16 %v650, %v648
        %v883 = vpack.c.b16 %v653, %v651
        %v884 = vpack.c.b16 %v654, %v652
        %v885 = vpack.c.b16 %v657, %v655
        %v886 = vpack.c.b16 %v658, %v656
        %v887 = vpack.c.b16 %v661, %v659
        %v888 = vpack.c.b16 %v662, %v660
        %v889 = vpack.c.b16 %v665, %v663
        %v890 = vpack.c.b16 %v666, %v664
        %v891 = vpack.c.b16 %v669, %v667
        %v892 = vpack.c.b16 %v670, %v668
        %v893 = vpack.c.b16 %v673, %v671
        %v894 = vpack.c.b16 %v674, %v672
        %v895 = vpack.c.b16 %v677, %v675
        %v896 = vpack.c.b16 %v678, %v676
        %v897 = vpack.c.b16 %v681, %v679
        %v898 = vpack.c.b16 %v682, %v680
        %v899 = vpack.c.b16 %v685, %v683
        %v900 = vpack.c.b16 %v686, %v684
        %v901 = vpack.c.b16 %v689, %v687
        %v902 = vpack.c.b16 %v690, %v688
        %v903 = vpack.c.b16 %v693, %v691
        %v904 = vpack.c.b16 %v694, %v692
        %v905 = vpack.c.b16 %v697, %v695
        %v906 = vpack.c.b16 %v698, %v696
        %v907 = vpack.c.b16 %v701, %v699
        %v908 = vpack.c.b16 %v702, %v700
        %v909 = vpack.c.b16 %v705, %v703
        %v910 = vpack.c.b16 %v706, %v704
        %v911 = vpack.c.b16 %v709, %v707
        %v912 = vpack.c.b16 %v710, %v708
        %v913 = vpack.c.b16 %v713, %v711
        %v914 = vpack.c.b16 %v714, %v712
        %v915 = vpack.c.b16 %v717, %v715
        %v916 = vpack.c.b16 %v718, %v716
        %v917 = vpack.c.b16 %v721, %v719
        %v918 = vpack.c.b16 %v722, %v720
        %v919 = vpack.c.b16 %v725, %v723
        %v920 = vpack.c.b16 %v726, %v724
        %v921 = vpack.c.b16 %v729, %v727
        %v922 = vpack.c.b16 %v730, %v728
        %v923 = vpack.c.b16 %v733, %v731
        %v924 = vpack.c.b16 %v734, %v732
        %v925 = vpack.c.b16 %v737, %v735
        %v926 = vpack.c.b16 %v738, %v736
        %v927 = vpack.c.b16 %v741, %v739
        %v928 = vpack.c.b16 %v742, %v740
        %v929 = vpack.c.b16 %v745, %v743
        %v930 = vpack.c.b16 %v746, %v744
        %v931 = vpack.c.b16 %v749, %v747
        %v932 = vpack.c.b16 %v750, %v748
        %v933 = vpack.c.b16 %v753, %v751
        %v934 = vpack.c.b16 %v754, %v752
        %v935 = vpack.c.b16 %v757, %v755
        %v936 = vpack.c.b16 %v758, %v756
        %v937 = vpack.c.b16 %v761, %v759
        %v938 = vpack.c.b16 %v762, %v760
        %v939 = vpack.c.b16 %v765, %v763
        %v940 = vpack.c.b16 %v766, %v764
        %v941 = vpack.c.b16 %v769, %v767
        %v942 = vpack.c.b16 %v770, %v768
        %v943 = vpack.c.b16 %v773, %v771
        %v944 = vpack.c.b16 %v774, %v772
        %v945 = vpack.c.b16 %v777, %v775
        %v946 = vpack.c.b16 %v778, %v776
        %v947 = vpack.c.b16 %v781, %v779
        %v948 = vpack.c.b16 %v782, %v780
        %v949 = vpack.c.b16 %v785, %v783
        %v950 = vpack.c.b16 %v786, %v784
        %v951 = vpack.c.b16 %v789, %v787
        %v952 = vpack.c.b16 %v790, %v788
        %v953 = vpack.c.b16 %v793, %v791
        %v954 = vpack.c.b16 %v794, %v792
        %v955 = vpack.c.b16 %v797, %v795
        %v956 = vpack.c.b16 %v798, %v796
        %v957 = vpack.c.b16 %v801, %v799
        %v958 = vpack.c.b16 %v802, %v800
        %v959 = vpack.c.b16 %v805, %v803
        %v960 = vpack.c.b16 %v806, %v804
        %v961 = vpack.c.b16 %v809, %v807
        %v962 = vpack.c.b16 %v810, %v808
        %v963 = vpack.c.b16 %v813, %v811
        %v964 = vpack.c.b16 %v814, %v812
        %v965 = vpack.c.b16 %v817, %v815
        %v966 = vpack.c.b16 %v818, %v816
        %v967 = vpack.c.b16 %v821, %v819
        %v968 = vpack.c.b16 %v822, %v820
        %v969 = vpack.c.b16 %v825, %v823
        %v970 = vpack.c.b16 %v826, %v824
        %v971 = vpack.c.b16 %v829, %v827
        %v972 = vpack.c.b16 %v830, %v828
        %v973 = vpack.c.b16 %v833, %v831
        %v974 = vpack.c.b16 %v834, %v832
        %v975 = vpack.c.b16 %v837, %v835
        %v976 = vpack.c.b16 %v838, %v836
        %v977 = vpack.c.b16 %v841, %v839
        %v978 = vpack.c.b16 %v842, %v840
        %v979 = vpack.c.b16 %v845, %v843
        %v980 = vpack.c.b16 %v846, %v844
        %v981 = vpack.c.b16 %v849, %v847
        %v982 = vpack.c.b16 %v850, %v848
        %v983 = vpack.c.b16 %v853, %v851
        %v984 = vpack.c.b16 %v854, %v852
        %v985 = vpack.c.b16 %v857, %v855
        %v986 = vpack.c.b16 %v858, %v856
        %1115 = vmatprep.subr.bf16.mxu0 %v860
        %1116 = vmatpush1.bf16.msra.mxu0 %v859
        %1117 = vmatprep.subr.bf16.mxu0 %v862
        %1118 = vmatpush1.bf16.msra.mxu0 %v861
        %1119 = vmatprep.subr.bf16.mxu0 %v864
        %1120 = vmatpush1.bf16.msra.mxu0 %v863
        %1121 = vmatprep.subr.bf16.mxu0 %v866
        %1122 = vmatpush1.bf16.msra.mxu0 %v865
        %1123 = vmatprep.subr.bf16.mxu0 %v868
        %1124 = vmatpush1.bf16.msra.mxu0 %v867
        %1125 = vmatprep.subr.bf16.mxu0 %v870
        %1126 = vmatpush1.bf16.msra.mxu0 %v869
        %1127 = vmatprep.subr.bf16.mxu0 %v872
        %1128 = vmatpush1.bf16.msra.mxu0 %v871
        %1129 = vmatprep.subr.bf16.mxu0 %v874
        %1130 = vmatpush1.bf16.msra.mxu0 %v873
        %1131 = vmatprep.subr.bf16.mxu0 %v876
        %1132 = vmatpush1.bf16.msra.mxu0 %v875
        %1133 = vmatprep.subr.bf16.mxu0 %v878
        %1134 = vmatpush1.bf16.msra.mxu0 %v877
        %1135 = vmatprep.subr.bf16.mxu0 %v880
        %1136 = vmatpush1.bf16.msra.mxu0 %v879
        %1137 = vmatprep.subr.bf16.mxu0 %v882
        %1138 = vmatpush1.bf16.msra.mxu0 %v881
        %1139 = vmatprep.subr.bf16.mxu0 %v884
        %1140 = vmatpush1.bf16.msra.mxu0 %v883
        %1141 = vmatprep.subr.bf16.mxu0 %v886
        %1142 = vmatpush1.bf16.msra.mxu0 %v885
        %1143 = vmatprep.subr.bf16.mxu0 %v888
        %1144 = vmatpush1.bf16.msra.mxu0 %v887
        %1145 = vmatprep.subr.bf16.mxu0 %v890
        %1146 = vmatpush1.bf16.msra.mxu0 %v889
        %1147 = vmatprep.mubr.bf16.mxu0 %v460
        %1148 = vmatmul.mubr.bf16.gmra.mrb[0].mxu0 %v459
        %v1149 = vpop.f32.mrb[0].mxu0
        %v1150 = vadd.f32 0.0, %v1149
        %v1151 = vpop.f32.mrb[0].mxu0
        %v1152 = vadd.f32 0.0, %v1151
        %v1153 = vpop.f32.mrb[0].mxu0
        %v1154 = vadd.f32 0.0, %v1153
        %v1155 = vpop.f32.mrb[0].mxu0
        %v1156 = vadd.f32 0.0, %v1155
        %1157 = vdwg.mxu0
        %1158 = vmatprep.subr.bf16.mxu0 %v892
        %1159 = vmatpush1.bf16.msra.mxu0 %v891
        %1160 = vmatprep.subr.bf16.mxu0 %v894
        %1161 = vmatpush1.bf16.msra.mxu0 %v893
        %1162 = vmatprep.subr.bf16.mxu0 %v896
        %1163 = vmatpush1.bf16.msra.mxu0 %v895
        %1164 = vmatprep.subr.bf16.mxu0 %v898
        %1165 = vmatpush1.bf16.msra.mxu0 %v897
        %1166 = vmatprep.subr.bf16.mxu0 %v900
        %1167 = vmatpush1.bf16.msra.mxu0 %v899
        %1168 = vmatprep.subr.bf16.mxu0 %v902
        %1169 = vmatpush1.bf16.msra.mxu0 %v901
        %1170 = vmatprep.subr.bf16.mxu0 %v904
        %1171 = vmatpush1.bf16.msra.mxu0 %v903
        %1172 = vmatprep.subr.bf16.mxu0 %v906
        %1173 = vmatpush1.bf16.msra.mxu0 %v905
        %1174 = vmatprep.subr.bf16.mxu0 %v908
        %1175 = vmatpush1.bf16.msra.mxu0 %v907
        %1176 = vmatprep.subr.bf16.mxu0 %v910
        %1177 = vmatpush1.bf16.msra.mxu0 %v909
        %1178 = vmatprep.subr.bf16.mxu0 %v912
        %1179 = vmatpush1.bf16.msra.mxu0 %v911
        %1180 = vmatprep.subr.bf16.mxu0 %v914
        %1181 = vmatpush1.bf16.msra.mxu0 %v913
        %1182 = vmatprep.subr.bf16.mxu0 %v916
        %1183 = vmatpush1.bf16.msra.mxu0 %v915
        %1184 = vmatprep.subr.bf16.mxu0 %v918
        %1185 = vmatpush1.bf16.msra.mxu0 %v917
        %1186 = vmatprep.subr.bf16.mxu0 %v920
        %1187 = vmatpush1.bf16.msra.mxu0 %v919
        %1188 = vmatprep.subr.bf16.mxu0 %v922
        %1189 = vmatpush1.bf16.msra.mxu0 %v921
        %1190 = vmatprep.mubr.bf16.mxu0 %v462
        %1191 = vmatmul.mubr.bf16.gmra.mrb[0].mxu0 %v461
        %v1192 = vpop.f32.mrb[0].mxu0
        %v1193 = vadd.f32 %v1150, %v1192
        %v1194 = vpop.f32.mrb[0].mxu0
        %v1195 = vadd.f32 %v1152, %v1194
        %v1196 = vpop.f32.mrb[0].mxu0
        %v1197 = vadd.f32 %v1154, %v1196
        %v1198 = vpop.f32.mrb[0].mxu0
        %v1199 = vadd.f32 %v1156, %v1198
        %1200 = vdwg.mxu0
        %1201 = vmatprep.subr.bf16.mxu0 %v924
        %1202 = vmatpush1.bf16.msra.mxu0 %v923
        %1203 = vmatprep.subr.bf16.mxu0 %v926
        %1204 = vmatpush1.bf16.msra.mxu0 %v925
        %1205 = vmatprep.subr.bf16.mxu0 %v928
        %1206 = vmatpush1.bf16.msra.mxu0 %v927
        %1207 = vmatprep.subr.bf16.mxu0 %v930
        %1208 = vmatpush1.bf16.msra.mxu0 %v929
        %1209 = vmatprep.subr.bf16.mxu0 %v932
        %1210 = vmatpush1.bf16.msra.mxu0 %v931
        %1211 = vmatprep.subr.bf16.mxu0 %v934
        %1212 = vmatpush1.bf16.msra.mxu0 %v933
        %1213 = vmatprep.subr.bf16.mxu0 %v936
        %1214 = vmatpush1.bf16.msra.mxu0 %v935
        %1215 = vmatprep.subr.bf16.mxu0 %v938
        %1216 = vmatpush1.bf16.msra.mxu0 %v937
        %1217 = vmatprep.subr.bf16.mxu0 %v940
        %1218 = vmatpush1.bf16.msra.mxu0 %v939
        %1219 = vmatprep.subr.bf16.mxu0 %v942
        %1220 = vmatpush1.bf16.msra.mxu0 %v941
        %1221 = vmatprep.subr.bf16.mxu0 %v944
        %1222 = vmatpush1.bf16.msra.mxu0 %v943
        %1223 = vmatprep.subr.bf16.mxu0 %v946
        %1224 = vmatpush1.bf16.msra.mxu0 %v945
        %1225 = vmatprep.subr.bf16.mxu0 %v948
        %1226 = vmatpush1.bf16.msra.mxu0 %v947
        %1227 = vmatprep.subr.bf16.mxu0 %v950
        %1228 = vmatpush1.bf16.msra.mxu0 %v949
        %1229 = vmatprep.subr.bf16.mxu0 %v952
        %1230 = vmatpush1.bf16.msra.mxu0 %v951
        %1231 = vmatprep.subr.bf16.mxu0 %v954
        %1232 = vmatpush1.bf16.msra.mxu0 %v953
        %1233 = vmatprep.mubr.bf16.mxu0 %v464
        %1234 = vmatmul.mubr.bf16.gmra.mrb[0].mxu0 %v463
        %v1235 = vpop.f32.mrb[0].mxu0
        %v1236 = vadd.f32 %v1193, %v1235
        %v1237 = vpop.f32.mrb[0].mxu0
        %v1238 = vadd.f32 %v1195, %v1237
        %v1239 = vpop.f32.mrb[0].mxu0
        %v1240 = vadd.f32 %v1197, %v1239
        %v1241 = vpop.f32.mrb[0].mxu0
        %v1242 = vadd.f32 %v1199, %v1241
        %1243 = vdwg.mxu0
        %1244 = vmatprep.subr.bf16.mxu0 %v956
        %1245 = vmatpush1.bf16.msra.mxu0 %v955
        %1246 = vmatprep.subr.bf16.mxu0 %v958
        %1247 = vmatpush1.bf16.msra.mxu0 %v957
        %1248 = vmatprep.subr.bf16.mxu0 %v960
        %1249 = vmatpush1.bf16.msra.mxu0 %v959
        %1250 = vmatprep.subr.bf16.mxu0 %v962
        %1251 = vmatpush1.bf16.msra.mxu0 %v961
        %1252 = vmatprep.subr.bf16.mxu0 %v964
        %1253 = vmatpush1.bf16.msra.mxu0 %v963
        %1254 = vmatprep.subr.bf16.mxu0 %v966
        %1255 = vmatpush1.bf16.msra.mxu0 %v965
        %1256 = vmatprep.subr.bf16.mxu0 %v968
        %1257 = vmatpush1.bf16.msra.mxu0 %v967
        %1258 = vmatprep.subr.bf16.mxu0 %v970
        %1259 = vmatpush1.bf16.msra.mxu0 %v969
        %1260 = vmatprep.subr.bf16.mxu0 %v972
        %1261 = vmatpush1.bf16.msra.mxu0 %v971
        %1262 = vmatprep.subr.bf16.mxu0 %v974
        %1263 = vmatpush1.bf16.msra.mxu0 %v973
        %1264 = vmatprep.subr.bf16.mxu0 %v976
        %1265 = vmatpush1.bf16.msra.mxu0 %v975
        %1266 = vmatprep.subr.bf16.mxu0 %v978
        %1267 = vmatpush1.bf16.msra.mxu0 %v977
        %1268 = vmatprep.subr.bf16.mxu0 %v980
        %1269 = vmatpush1.bf16.msra.mxu0 %v979
        %1270 = vmatprep.subr.bf16.mxu0 %v982
        %1271 = vmatpush1.bf16.msra.mxu0 %v981
        %1272 = vmatprep.subr.bf16.mxu0 %v984
        %1273 = vmatpush1.bf16.msra.mxu0 %v983
        %1274 = vmatprep.subr.bf16.mxu0 %v986
        %1275 = vmatpush1.bf16.msra.mxu0 %v985
        %1276 = vmatprep.mubr.bf16.mxu0 %v466
        %1277 = vmatmul.mubr.bf16.gmra.mrb[0].mxu0 %v465
        %v1278 = vpop.f32.mrb[0].mxu0
        %v1279 = vadd.f32 %v1236, %v1278
        %v1280 = vpop.f32.mrb[0].mxu0
        %v1281 = vadd.f32 %v1238, %v1280
        %v1282 = vpop.f32.mrb[0].mxu0
        %v1283 = vadd.f32 %v1240, %v1282
        %v1284 = vpop.f32.mrb[0].mxu0
        %v1285 = vadd.f32 %v1242, %v1284
        %1286 = vdwg.mxu0
        %v1287 = vadd.f32 %v1279, %v1283
        %v1288 = vrot.slane %v1287, 4
        %v1289 = vadd.f32 %v1287, %v1288
        %v1290 = vrot.slane %v1289, 2
        %v1291 = vadd.f32 %v1289, %v1290
        %v1292 = vrot.slane %v1291, 1
        %v1293 = vadd.f32 %v1291, %v1292
        %v1294 = vadd.f32 %v1281, %v1285
        %v1295 = vrot.slane %v1294, 4
        %v1296 = vadd.f32 %v1294, %v1295
        %v1297 = vrot.slane %v1296, 2
        %v1298 = vadd.f32 %v1296, %v1297
        %v1299 = vrot.slane %v1298, 1
        %v1300 = vadd.f32 %v1298, %v1299
        %v1301 = vrcp.pop 16.0
        %v1302 = vmul.f32 %v1293, %v1301
        %v1303 = vmul.f32 %v1300, %v1301
        %v1304 = vsub.f32 %v1279, %v1302
        %v1305 = vsub.f32 %v1281, %v1303
        %v1306 = vsub.f32 %v1283, %v1302
        %v1307 = vsub.f32 %v1285, %v1303
        %v1308 = vmul.f32 %v1304, %v1304
        %v1309 = vmul.f32 %v1305, %v1305
        %v1310 = vmul.f32 %v1306, %v1306
        %v1311 = vmul.f32 %v1307, %v1307
        %v1312 = vadd.f32 %v1308, %v1310
        %v1313 = vrot.slane %v1312, 4
        %v1314 = vadd.f32 %v1312, %v1313
        %v1315 = vrot.slane %v1314, 2
        %v1316 = vadd.f32 %v1314, %v1315
        %v1317 = vrot.slane %v1316, 1
        %v1318 = vadd.f32 %v1316, %v1317
        %v1319 = vadd.f32 %v1309, %v1311
        %v1320 = vrot.slane %v1319, 4
        %v1321 = vadd.f32 %v1319, %v1320
        %v1322 = vrot.slane %v1321, 2
        %v1323 = vadd.f32 %v1321, %v1322
        %v1324 = vrot.slane %v1323, 1
        %v1325 = vadd.f32 %v1323, %v1324
        %v1326 = vmul.f32 %v1318, %v1301
        %v1327 = vmul.f32 %v1325, %v1301
        %v1328 = vld [vmem:[%s291] sm:$0x3]
        %v1329 = vadd.f32 %v1326, 1e-05
        %v1330 = vadd.f32 %v1327, 1e-05
        %v1331 = vrsqrt.pop %v1329
        %v1332 = vrsqrt.pop %v1330
        %v1335 = vcombine.low %v1331, %v1332
        %v1337 = vunpack.c.l.s4 1966171168
        %v1338 = vunpack.c.0.s8 %v1337
        %v1339 = vlaneseq
        %v1340 = vshrl.u32 %v1339, 7
        %v1341 = vsub.s32 %v1338, %v1340
        %v1342 = vrot.slane %v1335, %v1341
        %v1344 = vunpack.c.l.s4 1966171168
        %v1345 = vunpack.c.0.s8 %v1344
        %v1346 = vlaneseq
        %v1347 = vshrl.u32 %v1346, 7
        %v1348 = vsub.s32 %v1345, %v1347
        %v1349 = vrot.slane %v1342, %v1348
        %v1351 = vmul.f32 %v1328, %v1349
        %v1352 = vld [vmem:[%s296] sm:$0x3]
        %s1353 = sld [smem:[#allocation2]]
        %v1354 = vstv %s1353
        %v1355 = vadd.f32 %v1352, %v1354
        %v1357 = vlaneseq
        %v1358 = vshrl.u32 %v1357, 7
        %v1359 = vsub.s32 0, %v1358
        %v1360 = vrot.slane %v1351, %v1359
        %v1361 = vlaneseq
        %v1362 = vshrl.u32 %v1361, 7
        %v1363 = vsub.s32 1, %v1362
        %v1364 = vrot.slane %v1351, %v1363
        %v1367 = vmul.f32 %v1304, %v1360
        %v1368 = vmul.f32 %v1305, %v1364
        %v1369 = vmul.f32 %v1306, %v1360
        %v1370 = vmul.f32 %v1307, %v1364
        %v1372 = vlaneseq
        %v1373 = vshrl.u32 %v1372, 7
        %v1374 = vsub.s32 0, %v1373
        %v1375 = vrot.slane %v1355, %v1374
        %v1376 = vlaneseq
        %v1377 = vshrl.u32 %v1376, 7
        %v1378 = vsub.s32 1, %v1377
        %v1379 = vrot.slane %v1355, %v1378
        %v1382 = vadd.f32 %v1367, %v1375
        %v1383 = vadd.f32 %v1368, %v1379
        %v1384 = vadd.f32 %v1369, %v1375
        %v1385 = vadd.f32 %v1370, %v1379
        %v1386 = vsub.f32 0.0, %v1382
        %v1387 = vsub.f32 0.0, %v1383
        %v1388 = vsub.f32 0.0, %v1384
        %v1389 = vsub.f32 0.0, %v1385
        %v1390 = vmul.f32 %v1386, 1.442695
        %v1391 = vpow.pop %v1390
        %v1392 = vmul.f32 %v1387, 1.442695
        %v1393 = vpow.pop %v1392
        %v1394 = vmul.f32 %v1388, 1.442695
        %v1395 = vpow.pop %v1394
        %v1396 = vmul.f32 %v1389, 1.442695
        %v1397 = vpow.pop %v1396
        %v1398 = vadd.f32 %v1391, 1.0
        %v1399 = vadd.f32 %v1393, 1.0
        %v1400 = vadd.f32 %v1395, 1.0
        %v1401 = vadd.f32 %v1397, 1.0
        %v1402 = vrcp.pop %v1398
        %v1403 = vrcp.pop %v1399
        %v1404 = vrcp.pop %v1400
        %v1405 = vrcp.pop %v1401
        %v1406 = vmul.f32 %v1382, %v1402
        %v1407 = vmul.f32 %v1383, %v1403
        %v1408 = vmul.f32 %v1384, %v1404
        %v1409 = vmul.f32 %v1385, %v1405
        %1410 = vst [vmem:[%s286] sm:$0xff] %v1406
        %1411 = vst [vmem:[%s286 + $0x8] sm:$0xff] %v1407
        %1412 = vst [vmem:[%s286 + $0x10] sm:$0xff] %v1408
        %1413 = vst [vmem:[%s286 + $0x18] sm:$0xff] %v1409
        %s1414 = sand.u32 %s152, 1
        %s1415 = scalar_lea.sflag [#allocation5], %s1414
        %s1416 = sand.u32 %s152, 1
        %s1417 = smul.addr %s1416, 32
        %s1418 = scalar_lea.vmem [#allocation8], %s1417
        // Predicated region
        $region49: #{tpu_custom_call.1} parent=39 // pred_check
          %p1419 = pneg %p162
        $region50: #{tpu_custom_call.1} parent=39 // pred_check_branch
          %1421 = sbr.rel (%p1419) target = $region52
        $region51: #{tpu_custom_call.1} parent=39 // pred_region
          %s1422 = smul.u32 2, %s24
          %s1424 = ssub.s32 512, 512
          %1425 = vsyncadd %s1415, %s1424
          %s1426 = smul.addr %s1422, 128
          %s1427 = scalar_lea.hbm %s5, %s1426
          %s1428 = sshll.u32 %s1418, 4
          %s1429 = int_to_ptr.vmem [resolvable:$true] %s1428
          %1434 = dma.vmem_to_hbm [thread:$0]  %s1429, 512, %s1427, %s1415, 256, 512, 16
        $region52: #{tpu_custom_call.1} parent=39 // pred_fallthru
          _
      $region40: #{tpu_custom_call.1} parent=5 // pred_fallthru
        _
      %p1435 = scmp.le.s32.totalorder 2, %s19
      // Predicated region
      $region53: #{tpu_custom_call.1} parent=5 // pred_check
        %p1436 = pneg %p1435
      $region54: #{tpu_custom_call.1} parent=5 // pred_check_branch
        %1438 = sbr.rel (%p1436) target = $region56
      $region55: #{tpu_custom_call.1} parent=5 // pred_region
        %s1439 = ssub.s32 %s19, 2
        // Predicated region
        $region57: #{tpu_custom_call.1} parent=55 // pred_check
          %p1440 = pneg %p168
        $region58: #{tpu_custom_call.1} parent=55 // pred_check_branch
          %1442 = sbr.rel (%p1440) target = $region60
        $region59: #{tpu_custom_call.1} parent=55 // pred_region
          %s1443 = sand.u32 %s153, 1
          %s1444 = scalar_lea.sflag [#allocation5], %s1443
          %s1445 = sand.u32 %s153, 1
          %s1446 = smul.addr %s1445, 32
          %s1447 = scalar_lea.vmem [#allocation8], %s1446
          %1448 = dma.done %s1444, 512
        $region60: #{tpu_custom_call.1} parent=55 // pred_fallthru
          _
      $region56: #{tpu_custom_call.1} parent=5 // pred_fallthru
        _
    $region6: #{tpu_custom_call.1} parent=1 // loop_footer
      %s23 = sadd.s32 1, %s19
    $region7: #{tpu_custom_call.1} parent=1 // loop_footer_branch
      %18 = sbr.rel target = $region3
    $region8: #{tpu_custom_call.1} parent=1 // loop_exit
      _
    %1449 = vsyncpa [#allocation4], 1
    %s1450 = scalar_lea.sflag [#allocation4], 1
    %1451 = vsyncpa %s1450, 1
    %1452 = vsyncpa [#allocation7], 1
    %s1453 = scalar_lea.sflag [#allocation7], 1
    %1454 = vsyncpa %s1453, 1
    %1455 = vsyncpa [#allocation5], 1
    %s1456 = scalar_lea.sflag [#allocation5], 1
    %1457 = vsyncpa %s1456, 1

</llo_original>
